<compile_context>
chip_gen: v6e
topology: v6e:2x2x1
jax: 0.10.0
libtpu: 0.0.40
codegen_flags: <defaults>
</compile_context>

<pallas_src>
import functools

import numpy as np
import jax
import jax.numpy as jnp
from jax import lax
from jax.experimental import pallas as pl
from jax.experimental.pallas import tpu as pltpu


_STATIC_UNROLL_BATCH = 32  # above this, use fori_loop to bound code size


def _pos_enc_kernel(x_ref, pe_ref, o_ref, *, batch: int, d_model: int):
    # x_ref, o_ref: (TS, batch*d_model) tiles; pe_ref: (TS, d_model) tile.
    pe = pe_ref[...]
    if batch <= _STATIC_UNROLL_BATCH:
        # Static unroll: each iteration is a zero-cost static lane-slice view,
        # one VPU add, one store.  No in-kernel reshape/concat needed.
        for b in range(batch):
            sl = pl.ds(b * d_model, d_model)
            o_ref[:, sl] = (x_ref[:, sl] + pe).astype(o_ref.dtype)
    else:
        # Large batch: fori_loop keeps instruction count / vreg live ranges
        # bounded (the kernel is DMA-bound, so unrolling buys nothing).
        def body(b, carry):
            start = pl.multiple_of(b * d_model, d_model)  # aligned when D%128==0
            sl = pl.ds(start, d_model)
            o_ref[:, sl] = (x_ref[:, sl] + pe).astype(o_ref.dtype)
            return carry

        lax.fori_loop(0, batch, body, 0, unroll=False)


def make_pe_table(d_model: int, max_len: int = 5000,
                  dtype=jnp.float32) -> jnp.ndarray:
    """Sinusoidal positional-encoding table, shape (max_len, d_model).

    Pre-cast to the activation dtype once at model init so the forward pass
    never pays a per-call slice+cast HBM pass.
    """
    position = np.arange(0, max_len, dtype=np.float32)[:, None]          # (max_len, 1)
    div_term = np.exp(np.arange(0, d_model, 2, dtype=np.float32)
                      * (-np.log(10000.0) / d_model))                    # (ceil(d/2),)
    pe = np.zeros((max_len, d_model), dtype=np.float32)
    pe[:, 0::2] = np.sin(position * div_term)
    pe[:, 1::2] = np.cos(position * div_term)[:, : d_model // 2]
    return jnp.asarray(pe, dtype=dtype)


def _sublane_granularity(dtype) -> int:
    """Packed-sublane row granularity for a dtype (8 f32, 16 bf16, 32 int8/fp8)."""
    itemsize = jnp.dtype(dtype).itemsize
    return max(8, 32 // max(itemsize, 1))


def _choose_seq_tile(seq_len: int, row_bytes: int, dtype,
                     target_block_bytes: int = 6 << 20) -> int:
    """Pick the S-tile so each x/out block is ~6 MiB.

    Big enough to amortize the ~0.35 us per-step overhead near the HBM roofline
    (matters most on v7x's 3.2 TB/s HBM), small enough that the double-buffered
    x + out + pe footprint stays well under v7x's 64 MiB physical VMEM (we raise
    vmem_limit_bytes explicitly for v5e/v6e's 16/32 MiB default scoped limits).
    The tile is also capped so the grid keeps >= 2 blocks whenever S allows, so
    v7x's two TensorCores both get work.
    """
    gran = _sublane_granularity(dtype)
    rows = max(gran, (target_block_bytes // max(row_bytes, 1)) // gran * gran)
    # Keep >= 2 S-tiles so the single "parallel" grid axis can shard across
    # v7x's 2 TensorCores (near-neutral on v5e/v6e).
    half = (seq_len // 2) // gran * gran
    if half >= gran:
        rows = min(rows, half)
    if rows >= seq_len:
        return seq_len                      # single block: full-dim block is always legal
    return rows


def positional_encoding(x: jnp.ndarray, pe_table: jnp.ndarray,
                        seq_block: int | None = None,
                        donate: bool = False) -> jnp.ndarray:
    """x: (seq_len, batch, d_model). Returns x + pe[:seq_len] (eval-mode dropout).

    pe_table: (max_len, d_model), ideally pre-cast to x.dtype at init.
    donate=True aliases the activation buffer (input_output_aliases={0: 0});
    keep it False when the caller still needs x (e.g. reference checks).

    Note: for tiny S*B*D this broadcast-add is best left to XLA fusion; the
    Pallas path targets production-sized activations.
    """
    S, B, D = x.shape
    if S > pe_table.shape[0]:
        raise ValueError(f"seq_len={S} exceeds pe table max_len={pe_table.shape[0]}")
    # Production path: pe_table is already in the activation dtype (cast once at
    # init).  Fall back to a per-call cast only if the caller didn't.
    pe = pe_table if pe_table.dtype == x.dtype else pe_table.astype(x.dtype)

    # Lane-dense layout: contiguous (free) reshape puts batch*d_model on lanes.
    x2 = x.reshape(S, B * D)
    itemsize = jnp.dtype(x.dtype).itemsize

    ts = seq_block if seq_block is not None else _choose_seq_tile(
        S, B * D * itemsize, x.dtype)
    grid = (pl.cdiv(S, ts),)

    # If the padded grid extent would overrun the full pe table, slice it down
    # (rare; only when S is within one tile of max_len).  Partial boundary
    # blocks on pe are then handled like x's: padded rows are never stored.
    if grid[0] * ts > pe.shape[0]:
        pe = pe[:S]

    # Explicit scoped-VMEM budget: 2x double-buffered x + out blocks + pe.
    # Keeps large tiles legal on v5e (16 MiB default) / v6e (32 MiB default)
    # while staying far below v7x's 64 MiB physical VMEM for the 6 MiB target.
    block_x_bytes = ts * B * D * itemsize
    block_pe_bytes = ts * D * jnp.dtype(pe.dtype).itemsize
    vmem_need = 2 * block_x_bytes + 2 * block_x_bytes + 2 * block_pe_bytes
    vmem_limit = max(32 << 20, int(vmem_need * 5 // 4) + (1 << 20))

    kernel = functools.partial(_pos_enc_kernel, batch=B, d_model=D)

    out2 = pl.pallas_call(
        kernel,
        out_shape=jax.ShapeDtypeStruct((S, B * D), x.dtype),
        grid=grid,
        in_specs=[
            pl.BlockSpec((ts, B * D), lambda i: (i, 0)),   # x tile (streamed)
            pl.BlockSpec((ts, D), lambda i: (i, 0)),       # pe tile (once per S-tile)
        ],
        out_specs=pl.BlockSpec((ts, B * D), lambda i: (i, 0)),
        compiler_params=pltpu.CompilerParams(
            # Independent S-tiles: lets v7x shard the grid over its 2 TensorCores.
            dimension_semantics=("parallel",),
            vmem_limit_bytes=vmem_limit,
        ),
        input_output_aliases=({0: 0} if donate else {}),
    )(x2, pe)
    return out2.reshape(S, B, D)


if __name__ == "__main__":
    # Small shapes consistent with the module: seq=8, batch=2, d_model=32.
    seq_len, batch, d_model = 8, 2, 32
    max_len = 64  # keep the synthetic table small (module default is 5000)

    key = jax.random.PRNGKey(0)
    x = jax.random.normal(key, (seq_len, batch, d_model), dtype=jnp.float32)
    # Pre-cast the table once at "init" (here: to f32, already the case).
    pe_table = make_pe_table(d_model, max_len, dtype=x.dtype)

    out = jax.block_until_ready(positional_encoding(x, pe_table))
    ref = x + pe_table[:seq_len][:, None, :]
    np.testing.assert_allclose(np.asarray(out), np.asarray(ref), rtol=1e-6, atol=1e-6)

    # Also exercise the multi-block streaming path (3 S-tiles, incl. an
    # auto-chosen tile) at a small size.
    seq_len2 = 48
    x2 = jax.random.normal(jax.random.PRNGKey(1), (seq_len2, batch, d_model),
                           dtype=jnp.float32)
    out2 = jax.block_until_ready(positional_encoding(x2, pe_table, seq_block=16))
    ref2 = x2 + pe_table[:seq_len2][:, None, :]
    np.testing.assert_allclose(np.asarray(out2), np.asarray(ref2),
                               rtol=1e-6, atol=1e-6)

    out3 = jax.block_until_ready(positional_encoding(x2, pe_table))  # auto tile
    np.testing.assert_allclose(np.asarray(out3), np.asarray(ref2),
                               rtol=1e-6, atol=1e-6)

    print("KERNEL_OK")
</pallas_src>

<mosaic_0001>
module attributes {stable_mosaic.version = 11 : i64} {
  func.func @_pos_enc_kernel(%arg0: i32, %arg1: memref<8x64xf32, #tpu.memory_space<vmem>>, %arg2: memref<8x32xf32, #tpu.memory_space<vmem>>, %arg3: memref<8x64xf32, #tpu.memory_space<vmem>>) attributes {dimension_semantics = [#tpu.dimension_semantics<parallel>], iteration_bounds = array<i64: 1>, scalar_prefetch = 0 : i64, scratch_operands = 0 : i64, tpu.core_type = #tpu.core_type<tc>, window_params = [{transform_indices = @transform_0, window_bounds = array<i64: 8, 64>}, {transform_indices = @transform_1, window_bounds = array<i64: 8, 32>}, {transform_indices = @transform_2, window_bounds = array<i64: 8, 64>}]} {
    %c0 = arith.constant 0 : index
    %c0_0 = arith.constant 0 : index
    %0 = vector.load %arg2[%c0, %c0_0] : memref<8x32xf32, #tpu.memory_space<vmem>>, vector<8x32xf32>
    %c0_1 = arith.constant 0 : index
    %c0_2 = arith.constant 0 : index
    %1 = vector.load %arg1[%c0_1, %c0_2] : memref<8x64xf32, #tpu.memory_space<vmem>>, vector<8x32xf32>
    %2 = arith.addf %1, %0 : vector<8x32xf32>
    %c0_3 = arith.constant 0 : index
    %c0_4 = arith.constant 0 : index
    %3 = vector.load %arg3[%c0_3, %c0_4] : memref<8x64xf32, #tpu.memory_space<vmem>>, vector<8x32xf32>
    tpu.vector_store %arg3[%c0_3, %c0_4], %2 {strides = array<i32>} : memref<8x64xf32, #tpu.memory_space<vmem>>, vector<8x32xf32>,
    %c0_5 = arith.constant 0 : index
    %c32 = arith.constant 32 : index
    %4 = vector.load %arg1[%c0_5, %c32] : memref<8x64xf32, #tpu.memory_space<vmem>>, vector<8x32xf32>
    %5 = arith.addf %4, %0 : vector<8x32xf32>
    %c0_6 = arith.constant 0 : index
    %c32_7 = arith.constant 32 : index
    %6 = vector.load %arg3[%c0_6, %c32_7] : memref<8x64xf32, #tpu.memory_space<vmem>>, vector<8x32xf32>
    tpu.vector_store %arg3[%c0_6, %c32_7], %5 {strides = array<i32>} : memref<8x64xf32, #tpu.memory_space<vmem>>, vector<8x32xf32>,
    return
  }
  func.func @transform_0(%arg0: i32) -> (i32, i32) {
    %c0_i32 = arith.constant 0 : i32
    %c0_i32_0 = arith.constant 0 : i32
    return %arg0, %c0_i32 : i32, i32
  }
  func.func @transform_1(%arg0: i32) -> (i32, i32) {
    %c0_i32 = arith.constant 0 : i32
    %c0_i32_0 = arith.constant 0 : i32
    return %arg0, %c0_i32 : i32, i32
  }
  func.func @transform_2(%arg0: i32) -> (i32, i32) {
    %c0_i32 = arith.constant 0 : i32
    %c0_i32_0 = arith.constant 0 : i32
    return %arg0, %c0_i32 : i32, i32
  }
}

</mosaic_0001>

<llo_original>
// kernel: tpu_custom_call.1
$region0: #{tpu_custom_call.1}
  #allocation0 [shape = 'u32[]', space=smem, size = 0x4, offset = 0x4, fixed_abs, tag = 'smem constant byte address 0x4 - core index']
  #allocation1 [shape = 'u32[144,128]{1,0:T(1,128)}', space=vmem, size = 0x12000, scoped, tag = 'internal scratch']
  %s0 = inlined_call_operand.vmem [shape: f32[8,64], index: 0, kind: input, shape index: {}]
  %s1 = inlined_call_operand.vmem [shape: f32[64,32], index: 1, kind: input, shape index: {}]
  %s2 = inlined_call_operand.hbm [shape: f32[8,64], index: 2, kind: output, shape index: {}]
  %s3 = sld [smem:[#allocation0]]
  $region18: #{tpu_custom_call.1} parent=0
    _
  %s5 = ssub.s32 1, %s3
  %s6 = scalar_select 0, %s5, %s3
  $region1: #{tpu_custom_call.1} parent=0
    #allocation2 [shape = 'u8[4096]{0}', space=vmem, size = 0x1000, scoped, tag = 'output window, operand 0, single buffered']
    #allocation3 [shape = 's32[1]{0}', space=sflag, size = 0x4, scoped, tag = 'scoped memory for tpu_custom_call.1']
    %7 = vsyncpa [#allocation3], 0
    // Predicated region
    $region2: #{tpu_custom_call.1} parent=1 // pred_check
      _
    $region3: #{tpu_custom_call.1} parent=1 // pred_check_branch
      %9 = sbr.rel (0) target = $region5
    $region4: #{tpu_custom_call.1} parent=1 // pred_region
      _
    $region5: #{tpu_custom_call.1} parent=1 // pred_fallthru
      _
    // Predicated region
    $region6: #{tpu_custom_call.1} parent=1 // pred_check
      _
    $region7: #{tpu_custom_call.1} parent=1 // pred_check_branch
      %11 = sbr.rel (0) target = $region9
    $region8: #{tpu_custom_call.1} parent=1 // pred_region
      _
    $region9: #{tpu_custom_call.1} parent=1 // pred_fallthru
      _
    %v12 = vld [vmem:[%s1] sm:$0xff]
    %v13 = vld [vmem:[%s0] sm:$0xff]
    %v14 = vadd.f32 %v13, %v12
    %vm15 = vcmask 261120
    %16 = vst.msk [vmem:[#allocation2] sm:$0xff] %vm15, %v14
    %v17 = vld [vmem:[%s0] sm:$0xff]
    %19 = vrot.lane.b32.xlu0 %v12, 32
    %v20 = vpop.permute.xlu0 %19
    %v22 = vadd.f32 %v17, %v20
    %vm23 = vcmask 523520
    %24 = vst.msk [vmem:[#allocation2] sm:$0xff] %vm23, %v22
    // Predicated region
    $region10: #{tpu_custom_call.1} parent=1 // pred_check
      _
    $region11: #{tpu_custom_call.1} parent=1 // pred_check_branch
      %26 = sbr.rel (0) target = $region13
    $region12: #{tpu_custom_call.1} parent=1 // pred_region
      %s28 = ssub.s32 128, 128
      %29 = vsyncadd [#allocation3], %s28
      %s31 = sshll.u32 [#allocation2], 4
      %s32 = int_to_ptr.vmem [resolvable:$true] %s31
      %34 = dma.vmem_to_hbm [thread:$0]  %s32, 128, %s2, [#allocation3]
    $region13: #{tpu_custom_call.1} parent=1 // pred_fallthru
      _
    // Predicated region
    $region14: #{tpu_custom_call.1} parent=1 // pred_check
      _
    $region15: #{tpu_custom_call.1} parent=1 // pred_check_branch
      %36 = sbr.rel (0) target = $region17
    $region16: #{tpu_custom_call.1} parent=1 // pred_region
      %37 = dma.done [#allocation3], 128
    $region17: #{tpu_custom_call.1} parent=1 // pred_fallthru
      _
    %38 = vsyncpa [#allocation3], 1

</llo_original>
